<compile_context>
chip_gen: v6e
topology: v6e:2x2x1
jax: 0.10.0
libtpu: 0.0.40
codegen_flags: <defaults>
</compile_context>

<pallas_src>
import math

import jax
import jax.numpy as jnp
from jax.experimental import pallas as pl
from jax.experimental.pallas import tpu as pltpu

_LANE_WIDTH = 512   # last dim of the 2D slab; multiple of 128 lanes
_BLOCK_ROWS = 512   # rows per grid step; 512x512 f32 = 1 MiB per buffer


def _make_noise_kernel(mean: float, std: float):
    """Build the elementwise Gaussian-noise kernel with (mean, std) baked in."""

    def _fmix32(h):
        # murmur3 finalizer: strong avalanche, pure 32-bit VPU integer ops.
        h = h ^ (h >> 16)
        h = h * jnp.uint32(0x85EBCA6B)
        h = h ^ (h >> 13)
        h = h * jnp.uint32(0xC2B2AE35)
        h = h ^ (h >> 16)
        return h

    def kernel(seed_ref, x_ref, o_ref):
        tr, w = x_ref.shape

        # Global element index of every lane in this tile (grid-invariant).
        row = jax.lax.broadcasted_iota(jnp.int32, (tr, w), 0)
        col = jax.lax.broadcasted_iota(jnp.int32, (tr, w), 1)
        gidx = ((pl.program_id(0) * tr + row) * w + col).astype(jnp.uint32)
        seed = seed_ref[0].astype(jnp.uint32)

        # Two decorrelated 32-bit streams keyed on (seed, element index).
        h1 = _fmix32(gidx ^ (seed * jnp.uint32(0x9E3779B9)))
        h2 = _fmix32((gidx + jnp.uint32(0x6A09E667)) ^ (seed * jnp.uint32(0xBB67AE85)))

        # Top 24 bits -> uniforms.  (>>8 keeps values in signed-int32 range so
        # only the always-supported signed int->float convert is needed.)
        inv24 = jnp.float32(1.0 / (1 << 24))
        u1 = ((h1 >> 8).astype(jnp.int32).astype(jnp.float32) + 1.0) * inv24  # (0, 1]
        u2 = (h2 >> 8).astype(jnp.int32).astype(jnp.float32) * inv24          # [0, 1)

        # Box-Muller -> standard normal (EUP: log/sqrt/cos; VPU does the rest).
        # TODO(synk): if the single EUP slot binds on v7x, swap Box-Muller for a
        # VPU-only sum-of-uniforms approximation.
        r = jnp.sqrt(jnp.float32(-2.0) * jnp.log(u1))
        noise = r * jnp.cos(jnp.float32(2.0 * math.pi) * u2)

        o_ref[...] = (x_ref[...].astype(jnp.float32)
                      + noise * jnp.float32(std)
                      + jnp.float32(mean))

    return kernel


def spec_add_gaussian_noise(spectrogram: jax.Array,
                            seed: int = 0,
                            mean: float = 0.0,
                            std: float = 0.01) -> jax.Array:
    """Pallas equivalent of SpecAddGaussianNoise.forward."""
    orig_shape = spectrogram.shape
    n = math.prod(orig_shape)

    # Lane-dense 2D slab: flatten everything, pad to a 512-wide last dim.
    w = _LANE_WIDTH
    rows = -(-n // w)
    flat = spectrogram.reshape(-1)
    pad = rows * w - n
    if pad:
        flat = jnp.pad(flat, (0, pad))
    x2d = flat.reshape(rows, w)

    # Row tile: full slab if small (block == full dim is always legal),
    # otherwise 512-row blocks (multiple of 8 sublanes).
    tr = rows if rows < _BLOCK_ROWS else _BLOCK_ROWS
    grid = (pl.cdiv(rows, tr),)

    seed_arr = jnp.asarray([seed], dtype=jnp.int32)

    out2d = pl.pallas_call(
        _make_noise_kernel(mean, std),
        out_shape=jax.ShapeDtypeStruct((rows, w), jnp.float32),
        grid=grid,
        in_specs=[
            pl.BlockSpec(memory_space=pltpu.MemorySpace.SMEM),   # seed scalar
            pl.BlockSpec((tr, w), lambda i: (i, 0)),             # input row tile
        ],
        out_specs=pl.BlockSpec((tr, w), lambda i: (i, 0)),
        compiler_params=pltpu.CompilerParams(
            dimension_semantics=("parallel",),
        ),
    )(seed_arr, x2d)

    return out2d.reshape(-1)[:n].reshape(orig_shape)


if __name__ == "__main__":
    key = jax.random.PRNGKey(0)
    # Small spectrogram batch: (B, C, F, T) = (2, 4, 16, 16)
    x = jax.random.normal(key, (2, 4, 16, 16), dtype=jnp.float32)

    out = spec_add_gaussian_noise(x, seed=42, mean=0.0, std=0.01)
    out = jax.block_until_ready(out)

    assert out.shape == x.shape
    assert out.dtype == jnp.float32

    diff = out - x
    max_dev = float(jnp.max(jnp.abs(diff)))
    # Noise was actually added ...
    assert max_dev > 0.0, "no noise was added"
    # ... and with std=0.01 it must stay tiny (Box-Muller caps |z| < 5.8).
    assert max_dev < 0.1, f"noise deviation too large: {max_dev}"
    # Distribution sanity: empirical std ~ 0.01, mean ~ 0.
    emp_std = float(jnp.std(diff))
    emp_mean = float(jnp.mean(diff))
    assert 0.005 < emp_std < 0.02, f"noise std off: {emp_std}"
    assert abs(emp_mean) < 0.002, f"noise mean off: {emp_mean}"

    print("KERNEL_OK")
</pallas_src>

<mosaic_0001>
module attributes {stable_mosaic.version = 11 : i64} {
  func.func @kernel(%arg0: i32, %arg1: memref<1xi32, #tpu.memory_space<smem>>, %arg2: memref<4x512xf32, #tpu.memory_space<vmem>>, %arg3: memref<4x512xf32, #tpu.memory_space<vmem>>) attributes {dimension_semantics = [#tpu.dimension_semantics<parallel>], iteration_bounds = array<i64: 1>, scalar_prefetch = 0 : i64, scratch_operands = 0 : i64, tpu.core_type = #tpu.core_type<tc>, window_params = [{transform_indices = @transform_0, window_bounds = array<i64: 1>}, {transform_indices = @transform_1, window_bounds = array<i64: 4, 512>}, {transform_indices = @transform_2, window_bounds = array<i64: 4, 512>}]} {
    %0 = tpu.iota {dimensions = array<i32: 0>} : vector<4x512xi32>
    %1 = tpu.iota {dimensions = array<i32: 1>} : vector<4x512xi32>
    %c4_i32 = arith.constant 4 : i32
    %2 = arith.muli %arg0, %c4_i32 : i32
    %3 = vector.broadcast %2 : i32 to vector<4x512xi32>
    %4 = arith.addi %3, %0 : vector<4x512xi32>
    %c512_i32 = arith.constant 512 : i32
    %5 = vector.broadcast %c512_i32 : i32 to vector<4x512xi32>
    %6 = arith.muli %4, %5 : vector<4x512xi32>
    %7 = arith.addi %6, %1 : vector<4x512xi32>
    %c0 = arith.constant 0 : index
    %8 = memref.load %arg1[%c0] : memref<1xi32, #tpu.memory_space<smem>>
    %c-1640531527_i32 = arith.constant -1640531527 : i32
    %9 = arith.muli %8, %c-1640531527_i32 : i32
    %10 = vector.broadcast %9 : i32 to vector<4x512xi32>
    %11 = arith.xori %7, %10 : vector<4x512xi32>
    %c16_i32 = arith.constant 16 : i32
    %12 = vector.broadcast %c16_i32 : i32 to vector<4x512xi32>
    %13 = arith.shrui %11, %12 : vector<4x512xi32>
    %14 = arith.xori %11, %13 : vector<4x512xi32>
    %c-2048144789_i32 = arith.constant -2048144789 : i32
    %15 = vector.broadcast %c-2048144789_i32 : i32 to vector<4x512xi32>
    %16 = arith.muli %14, %15 : vector<4x512xi32>
    %c13_i32 = arith.constant 13 : i32
    %17 = vector.broadcast %c13_i32 : i32 to vector<4x512xi32>
    %18 = arith.shrui %16, %17 : vector<4x512xi32>
    %19 = arith.xori %16, %18 : vector<4x512xi32>
    %c-1028477387_i32 = arith.constant -1028477387 : i32
    %20 = vector.broadcast %c-1028477387_i32 : i32 to vector<4x512xi32>
    %21 = arith.muli %19, %20 : vector<4x512xi32>
    %c16_i32_0 = arith.constant 16 : i32
    %22 = vector.broadcast %c16_i32_0 : i32 to vector<4x512xi32>
    %23 = arith.shrui %21, %22 : vector<4x512xi32>
    %24 = arith.xori %21, %23 : vector<4x512xi32>
    %c1779033703_i32 = arith.constant 1779033703 : i32
    %25 = vector.broadcast %c1779033703_i32 : i32 to vector<4x512xi32>
    %26 = arith.addi %7, %25 : vector<4x512xi32>
    %c-1150833019_i32 = arith.constant -1150833019 : i32
    %27 = arith.muli %8, %c-1150833019_i32 : i32
    %28 = vector.broadcast %27 : i32 to vector<4x512xi32>
    %29 = arith.xori %26, %28 : vector<4x512xi32>
    %c16_i32_1 = arith.constant 16 : i32
    %30 = vector.broadcast %c16_i32_1 : i32 to vector<4x512xi32>
    %31 = arith.shrui %29, %30 : vector<4x512xi32>
    %32 = arith.xori %29, %31 : vector<4x512xi32>
    %c-2048144789_i32_2 = arith.constant -2048144789 : i32
    %33 = vector.broadcast %c-2048144789_i32_2 : i32 to vector<4x512xi32>
    %34 = arith.muli %32, %33 : vector<4x512xi32>
    %c13_i32_3 = arith.constant 13 : i32
    %35 = vector.broadcast %c13_i32_3 : i32 to vector<4x512xi32>
    %36 = arith.shrui %34, %35 : vector<4x512xi32>
    %37 = arith.xori %34, %36 : vector<4x512xi32>
    %c-1028477387_i32_4 = arith.constant -1028477387 : i32
    %38 = vector.broadcast %c-1028477387_i32_4 : i32 to vector<4x512xi32>
    %39 = arith.muli %37, %38 : vector<4x512xi32>
    %c16_i32_5 = arith.constant 16 : i32
    %40 = vector.broadcast %c16_i32_5 : i32 to vector<4x512xi32>
    %41 = arith.shrui %39, %40 : vector<4x512xi32>
    %42 = arith.xori %39, %41 : vector<4x512xi32>
    %c8_i32 = arith.constant 8 : i32
    %43 = vector.broadcast %c8_i32 : i32 to vector<4x512xi32>
    %44 = arith.shrui %24, %43 : vector<4x512xi32>
    %45 = arith.sitofp %44 : vector<4x512xi32> to vector<4x512xf32>
    %cst = arith.constant 1.000000e+00 : f32
    %46 = vector.broadcast %cst : f32 to vector<4x512xf32>
    %47 = arith.addf %45, %46 : vector<4x512xf32>
    %cst_6 = arith.constant 5.96046448E-8 : f32
    %48 = vector.broadcast %cst_6 : f32 to vector<4x512xf32>
    %49 = arith.mulf %47, %48 : vector<4x512xf32>
    %c8_i32_7 = arith.constant 8 : i32
    %50 = vector.broadcast %c8_i32_7 : i32 to vector<4x512xi32>
    %51 = arith.shrui %42, %50 : vector<4x512xi32>
    %52 = arith.sitofp %51 : vector<4x512xi32> to vector<4x512xf32>
    %cst_8 = arith.constant 5.96046448E-8 : f32
    %53 = vector.broadcast %cst_8 : f32 to vector<4x512xf32>
    %54 = arith.mulf %52, %53 : vector<4x512xf32>
    %55 = math.log %49 : vector<4x512xf32>
    %cst_9 = arith.constant -2.000000e+00 : f32
    %56 = vector.broadcast %cst_9 : f32 to vector<4x512xf32>
    %57 = arith.mulf %56, %55 : vector<4x512xf32>
    %58 = math.sqrt %57 : vector<4x512xf32>
    %cst_10 = arith.constant 6.28318548 : f32
    %59 = vector.broadcast %cst_10 : f32 to vector<4x512xf32>
    %60 = arith.mulf %59, %54 : vector<4x512xf32>
    %61 = math.cos %60 : vector<4x512xf32>
    %62 = arith.mulf %58, %61 : vector<4x512xf32>
    %c0_11 = arith.constant 0 : index
    %c0_12 = arith.constant 0 : index
    %63 = vector.load %arg2[%c0_11, %c0_12] : memref<4x512xf32, #tpu.memory_space<vmem>>, vector<4x512xf32>
    %cst_13 = arith.constant 0.00999999977 : f32
    %64 = vector.broadcast %cst_13 : f32 to vector<4x512xf32>
    %65 = arith.mulf %62, %64 : vector<4x512xf32>
    %66 = arith.addf %63, %65 : vector<4x512xf32>
    %cst_14 = arith.constant 0.000000e+00 : f32
    %67 = vector.broadcast %cst_14 : f32 to vector<4x512xf32>
    %68 = arith.addf %66, %67 : vector<4x512xf32>
    %c0_15 = arith.constant 0 : index
    %c0_16 = arith.constant 0 : index
    %69 = vector.load %arg3[%c0_15, %c0_16] : memref<4x512xf32, #tpu.memory_space<vmem>>, vector<4x512xf32>
    tpu.vector_store %arg3[%c0_15, %c0_16], %68 {strides = array<i32>} : memref<4x512xf32, #tpu.memory_space<vmem>>, vector<4x512xf32>,
    return
  }
  func.func @transform_0(%arg0: i32) -> i32 {
    %c0_i32 = arith.constant 0 : i32
    %c0_i32_0 = arith.constant 0 : i32
    return %c0_i32 : i32
  }
  func.func @transform_1(%arg0: i32) -> (i32, i32) {
    %c0_i32 = arith.constant 0 : i32
    %c0_i32_0 = arith.constant 0 : i32
    return %arg0, %c0_i32 : i32, i32
  }
  func.func @transform_2(%arg0: i32) -> (i32, i32) {
    %c0_i32 = arith.constant 0 : i32
    %c0_i32_0 = arith.constant 0 : i32
    return %arg0, %c0_i32 : i32, i32
  }
}

</mosaic_0001>

<llo_original>
// kernel: tpu_custom_call.1
$region0: #{tpu_custom_call.1}
  #allocation0 [shape = 'u32[]', space=smem, size = 0x4, offset = 0x4, fixed_abs, tag = 'smem constant byte address 0x4 - core index']
  #allocation1 [shape = 'u32[144,128]{1,0:T(1,128)}', space=vmem, size = 0x12000, scoped, tag = 'internal scratch']
  #allocation2 [shape = 's32[1]{0:T(128)S(6)}', space=smem, size = 0x200, scoped, tag = 'scoped memory for tpu_custom_call.1']
  %s0 = inlined_call_operand.<no memory space> [shape: s32[1], index: 0, kind: input, shape index: {}]
  %s1 = inlined_call_operand.hbm [shape: f32[4,512], index: 1, kind: input, shape index: {}]
  %s2 = inlined_call_operand.hbm [shape: f32[4,512], index: 2, kind: output, shape index: {}]
  %s3 = sld [smem:[#allocation0]]
  $region22: #{tpu_custom_call.1} parent=0
    _
  %s5 = ssub.s32 1, %s3
  %s6 = scalar_select 0, %s5, %s3
  %7 = sst [smem:[#allocation2]] %s0
  $region1: #{tpu_custom_call.1} parent=0
    #allocation3 [shape = 'u8[8192]{0}', space=vmem, size = 0x2000, scoped, tag = 'input window, operand 1, single buffered']
    #allocation4 [shape = 's32[1]{0}', space=sflag, size = 0x4, scoped, tag = 'scoped memory for tpu_custom_call.1']
    #allocation5 [shape = 's32[1]{0}', space=sflag, size = 0x4, scoped, tag = 'scoped memory for tpu_custom_call.1']
    #allocation6 [shape = 'u8[8192]{0}', space=vmem, size = 0x2000, scoped, tag = 'output window, operand 0, single buffered']
    %8 = vsyncpa [#allocation4], 0
    %9 = vsyncpa [#allocation5], 0
    // Predicated region
    $region2: #{tpu_custom_call.1} parent=1 // pred_check
      _
    $region3: #{tpu_custom_call.1} parent=1 // pred_check_branch
      %11 = sbr.rel (0) target = $region5
    $region4: #{tpu_custom_call.1} parent=1 // pred_region
      _
    $region5: #{tpu_custom_call.1} parent=1 // pred_fallthru
      _
    // Predicated region
    $region6: #{tpu_custom_call.1} parent=1 // pred_check
      _
    $region7: #{tpu_custom_call.1} parent=1 // pred_check_branch
      %13 = sbr.rel (0) target = $region9
    $region8: #{tpu_custom_call.1} parent=1 // pred_region
      %s15 = ssub.s32 256, 256
      %16 = vsyncadd [#allocation4], %s15
      %s18 = sshll.u32 [#allocation3], 4
      %s19 = int_to_ptr.vmem [resolvable:$true] %s18
      %21 = dma.hbm_to_vmem [thread:$0]  %s1, 256, %s19, [#allocation4]
    $region9: #{tpu_custom_call.1} parent=1 // pred_fallthru
      _
    // Predicated region
    $region10: #{tpu_custom_call.1} parent=1 // pred_check
      _
    $region11: #{tpu_custom_call.1} parent=1 // pred_check_branch
      %23 = sbr.rel (0) target = $region13
    $region12: #{tpu_custom_call.1} parent=1 // pred_region
      %24 = dma.done [#allocation4], 256
    $region13: #{tpu_custom_call.1} parent=1 // pred_fallthru
      _
    %v25 = vlaneseq
    %v26 = vshrl.u32 %v25, 7
    %v27 = vlaneseq
    %v28 = vand.u32 %v27, 127
    %v29 = vadd.s32 %v28, 128
    %v30 = vadd.s32 %v28, 256
    %v31 = vadd.s32 %v28, 384
    %s32 = smul.u32 0, 4
    %v33 = vstv %s32
    %v34 = vadd.s32 %v33, %v26
    %v35 = vmul.u32 %v34, 512
    %v36 = vadd.s32 %v35, %v28
    %v37 = vadd.s32 %v35, %v29
    %v38 = vadd.s32 %v35, %v30
    %v39 = vadd.s32 %v35, %v31
    %s40 = sld [smem:[#allocation2]]
    %s41 = smul.u32 %s40, 2654435769
    %v42 = vstv %s41
    %v43 = vxor.u32 %v36, %v42
    %v44 = vxor.u32 %v37, %v42
    %v45 = vxor.u32 %v38, %v42
    %v46 = vxor.u32 %v39, %v42
    %v47 = vshrl.u32 %v43, 16
    %v48 = vshrl.u32 %v44, 16
    %v49 = vshrl.u32 %v45, 16
    %v50 = vshrl.u32 %v46, 16
    %v51 = vxor.u32 %v43, %v47
    %v52 = vxor.u32 %v44, %v48
    %v53 = vxor.u32 %v45, %v49
    %v54 = vxor.u32 %v46, %v50
    %v55 = vmul.u32 %v51, 2246822507
    %v56 = vmul.u32 %v52, 2246822507
    %v57 = vmul.u32 %v53, 2246822507
    %v58 = vmul.u32 %v54, 2246822507
    %v59 = vshrl.u32 %v55, 13
    %v60 = vshrl.u32 %v56, 13
    %v61 = vshrl.u32 %v57, 13
    %v62 = vshrl.u32 %v58, 13
    %v63 = vxor.u32 %v55, %v59
    %v64 = vxor.u32 %v56, %v60
    %v65 = vxor.u32 %v57, %v61
    %v66 = vxor.u32 %v58, %v62
    %v67 = vmul.u32 %v63, 3266489909
    %v68 = vmul.u32 %v64, 3266489909
    %v69 = vmul.u32 %v65, 3266489909
    %v70 = vmul.u32 %v66, 3266489909
    %v71 = vshrl.u32 %v67, 16
    %v72 = vshrl.u32 %v68, 16
    %v73 = vshrl.u32 %v69, 16
    %v74 = vshrl.u32 %v70, 16
    %v75 = vxor.u32 %v67, %v71
    %v76 = vxor.u32 %v68, %v72
    %v77 = vxor.u32 %v69, %v73
    %v78 = vxor.u32 %v70, %v74
    %v79 = vadd.s32 %v36, 1779033703
    %v80 = vadd.s32 %v37, 1779033703
    %v81 = vadd.s32 %v38, 1779033703
    %v82 = vadd.s32 %v39, 1779033703
    %s83 = smul.u32 %s40, 3144134277
    %v84 = vstv %s83
    %v85 = vxor.u32 %v79, %v84
    %v86 = vxor.u32 %v80, %v84
    %v87 = vxor.u32 %v81, %v84
    %v88 = vxor.u32 %v82, %v84
    %v89 = vshrl.u32 %v85, 16
    %v90 = vshrl.u32 %v86, 16
    %v91 = vshrl.u32 %v87, 16
    %v92 = vshrl.u32 %v88, 16
    %v93 = vxor.u32 %v85, %v89
    %v94 = vxor.u32 %v86, %v90
    %v95 = vxor.u32 %v87, %v91
    %v96 = vxor.u32 %v88, %v92
    %v97 = vmul.u32 %v93, 2246822507
    %v98 = vmul.u32 %v94, 2246822507
    %v99 = vmul.u32 %v95, 2246822507
    %v100 = vmul.u32 %v96, 2246822507
    %v101 = vshrl.u32 %v97, 13
    %v102 = vshrl.u32 %v98, 13
    %v103 = vshrl.u32 %v99, 13
    %v104 = vshrl.u32 %v100, 13
    %v105 = vxor.u32 %v97, %v101
    %v106 = vxor.u32 %v98, %v102
    %v107 = vxor.u32 %v99, %v103
    %v108 = vxor.u32 %v100, %v104
    %v109 = vmul.u32 %v105, 3266489909
    %v110 = vmul.u32 %v106, 3266489909
    %v111 = vmul.u32 %v107, 3266489909
    %v112 = vmul.u32 %v108, 3266489909
    %v113 = vshrl.u32 %v109, 16
    %v114 = vshrl.u32 %v110, 16
    %v115 = vshrl.u32 %v111, 16
    %v116 = vshrl.u32 %v112, 16
    %v117 = vxor.u32 %v109, %v113
    %v118 = vxor.u32 %v110, %v114
    %v119 = vxor.u32 %v111, %v115
    %v120 = vxor.u32 %v112, %v116
    %v121 = vshrl.u32 %v75, 8
    %v122 = vshrl.u32 %v76, 8
    %v123 = vshrl.u32 %v77, 8
    %v124 = vshrl.u32 %v78, 8
    %v125 = vcvt.s32.f32 %v121
    %v126 = vcvt.s32.f32 %v122
    %v127 = vcvt.s32.f32 %v123
    %v128 = vcvt.s32.f32 %v124
    %v129 = vadd.f32 %v125, 1.0
    %v130 = vadd.f32 %v126, 1.0
    %v131 = vadd.f32 %v127, 1.0
    %v132 = vadd.f32 %v128, 1.0
    %v133 = vmul.f32 %v129, 5.9604645e-08
    %v134 = vmul.f32 %v130, 5.9604645e-08
    %v135 = vmul.f32 %v131, 5.9604645e-08
    %v136 = vmul.f32 %v132, 5.9604645e-08
    %v137 = vshrl.u32 %v117, 8
    %v138 = vshrl.u32 %v118, 8
    %v139 = vshrl.u32 %v119, 8
    %v140 = vshrl.u32 %v120, 8
    %v141 = vcvt.s32.f32 %v137
    %v142 = vcvt.s32.f32 %v138
    %v143 = vcvt.s32.f32 %v139
    %v144 = vcvt.s32.f32 %v140
    %v145 = vmul.f32 %v141, 5.9604645e-08
    %v146 = vmul.f32 %v142, 5.9604645e-08
    %v147 = vmul.f32 %v143, 5.9604645e-08
    %v148 = vmul.f32 %v144, 5.9604645e-08
    %v149 = vlog2.pop %v133
    %v150 = vmul.f32 %v149, 0.6931472
    %v151 = vlog2.pop %v134
    %v152 = vmul.f32 %v151, 0.6931472
    %v153 = vlog2.pop %v135
    %v154 = vmul.f32 %v153, 0.6931472
    %v155 = vlog2.pop %v136
    %v156 = vmul.f32 %v155, 0.6931472
    %v157 = vmul.f32 %v150, -2.0
    %v158 = vmul.f32 %v152, -2.0
    %v159 = vmul.f32 %v154, -2.0
    %v160 = vmul.f32 %v156, -2.0
    %v161 = vrsqrt.pop %v157
    %v162 = vmul.f32 %v157, %v161
    %vm163 = vcmp.eq.f32.partialorder %v157, inf
    %v164 = vsel %vm163, %v157, %v162
    %vm165 = vcmp.eq.f32.partialorder %v157, 0.0
    %v166 = vand.u32 %v157, 2147483648
    %v167 = vsel %vm165, %v166, %v164
    %v168 = vrsqrt.pop %v158
    %v169 = vmul.f32 %v158, %v168
    %vm170 = vcmp.eq.f32.partialorder %v158, inf
    %v171 = vsel %vm170, %v158, %v169
    %vm172 = vcmp.eq.f32.partialorder %v158, 0.0
    %v173 = vand.u32 %v158, 2147483648
    %v174 = vsel %vm172, %v173, %v171
    %v175 = vrsqrt.pop %v159
    %v176 = vmul.f32 %v159, %v175
    %vm177 = vcmp.eq.f32.partialorder %v159, inf
    %v178 = vsel %vm177, %v159, %v176
    %vm179 = vcmp.eq.f32.partialorder %v159, 0.0
    %v180 = vand.u32 %v159, 2147483648
    %v181 = vsel %vm179, %v180, %v178
    %v182 = vrsqrt.pop %v160
    %v183 = vmul.f32 %v160, %v182
    %vm184 = vcmp.eq.f32.partialorder %v160, inf
    %v185 = vsel %vm184, %v160, %v183
    %vm186 = vcmp.eq.f32.partialorder %v160, 0.0
    %v187 = vand.u32 %v160, 2147483648
    %v188 = vsel %vm186, %v187, %v185
    %v189 = vmul.f32 %v145, 6.2831855
    %v190 = vmul.f32 %v146, 6.2831855
    %v191 = vmul.f32 %v147, 6.2831855
    %v192 = vmul.f32 %v148, 6.2831855
    %v193 = vand.u32 2147483647, %v189
    %vm194 = vcmp.le.f32.partialorder %v193, 0.7853982
    %vm195 = vcmp.lt.s32.totalorder %v189, 0
    %v196 = vand.u32 %v189, 2139095040
    %v197 = vshrl.u32 %v196, 23
    %v198 = vsub.s32 %v197, 127
    %v199 = vand.u32 2147483647, %v189
    %v200 = vand.u32 %v199, 8388607
    %v201 = vor.u32 %v200, 8388608
    %v202 = vsub.s32 0, %v201
    %v203 = vadd.s32 %v198, 1
    %vm204 = vcmp.gt.s32.totalorder %v203, 0
    %v205 = vsel %vm204, %v203, 0
    %v206 = vshrl.u32 %v205, 5
    %v207 = vand.u32 %v205, 31
    %v208 = vsub.s32 32, %v207
    %v209 = vshrl.u32 683565275, %v208
    %v210 = vshll.u32 683565275, %v207
    %v211 = vshrl.u32 2475754826, %v208
    %v212 = vor.u32 %v210, %v211
    %v213 = vshll.u32 2475754826, %v207
    %v214 = vshrl.u32 2131351028, %v208
    %v215 = vor.u32 %v213, %v214
    %v216 = vshll.u32 2131351028, %v207
    %v217 = vshrl.u32 2102212464, %v208
    %v218 = vor.u32 %v216, %v217
    %v219 = vshll.u32 2102212464, %v207
    %v220 = vshrl.u32 920167782, %v208
    %v221 = vor.u32 %v219, %v220
    %v222 = vshll.u32 920167782, %v207
    %v223 = vshrl.u32 1326507024, %v208
    %v224 = vor.u32 %v222, %v223
    %vm225 = vcmp.lt.s32.totalorder %v206, 1
    %vm226 = vcmp.lt.s32.totalorder %v206, 2
    %vm227 = vcmp.lt.s32.totalorder %v206, 3
    %vm228 = vcmp.lt.s32.totalorder %v206, 4
    %v229 = vsel %vm225, %v209, %v212
    %v230 = vsel %vm228, %v218, 2102212464
    %v231 = vsel %vm227, %v215, %v230
    %v232 = vsel %vm226, %v229, %v231
    %v233 = vsel %vm225, %v212, %v215
    %v234 = vsel %vm228, %v221, 920167782
    %v235 = vsel %vm227, %v218, %v234
    %v236 = vsel %vm226, %v233, %v235
    %v237 = vsel %vm225, %v215, %v218
    %v238 = vsel %vm228, %v224, 1326507024
    %v239 = vsel %vm227, %v221, %v238
    %v240 = vsel %vm226, %v237, %v239
    %v241 = vshll.u32 %v201, 8
    %v242 = vmul.u32.u64.compose %v241, %v240
    %v243 = vextract.low.u32 %v242
    %v244 = vextract.high.u32 %v242
    %v245 = vmul.u32.u64.compose %v241, %v236
    %v246 = vextract.low.u32 %v245
    %v247 = vextract.high.u32 %v245
    %v248 = vmul.u32 %v241, %v232
    %v249 = vadd.s32 %v244, %v246
    %vm250 = vc.u32 %v244, %v246
    %v251 = vadd.s32 %v247, 1
    %v252 = vsel %vm250, %v251, %v247
    %v253 = vadd.s32 %v248, %v252
    %v254 = vadd.s32 %v253, 536870912
    %v255 = vshrl.u32 %v254, 30
    %v256 = vshll.u32 %v255, 30
    %v257 = vsub.s32 %v253, %v256
    %vm258 = vcmp.lt.s32.totalorder %v257, 0
    %v259 = vsub.s32 0, %v257
    %v260 = vsel %vm258, %v259, %v257
    %v261 = vclz %v260
    %v262 = vsub.s32 %v261, 2
    %vm263 = vcmp.gt.s32.totalorder 0, %v262
    %v264 = vsel %vm263, 0, %v262
    %v265 = vsub.s32 32, %v264
    %v266 = vshll.u32 %v257, %v264
    %v267 = vshrl.u32 %v249, %v265
    %v268 = vor.u32 %v266, %v267
    %v269 = vsub.s32 4294967266, %v264
    %v270 = vadd.s32 %v269, 127
    %v271 = vshll.u32 %v270, 23
    %v272 = vor.u32 4788187, %v271
    %v273 = vand.u32 2147483647, %v272
    %v275 = vcvt.s32.f32 %v268
    %v276 = vmul.f32 %v275, %v273
    %v277 = vxor.u32 %v276, 2147483648
    %v278 = vsel %vm195, %v277, %v276
    %v279 = vsub.s32 4, %v255
    %v280 = vsel %vm195, %v279, %v255
    %v281 = vsel %vm194, %v189, %v278
    %v282 = vsel %vm194, 0, %v280
    %v283 = vcosq.f32.pop %v281
    %v284 = vsinq.f32.pop %v281
    %vm285 = vweird.f32 %v189
    %v286 = vand.u32 %v282, 3
    %vm287 = vcmp.lt.s32.totalorder %v286, 2
    %vm288 = vcmp.eq.s32.totalorder %v286, 0
    %v289 = vxor.u32 %v284, 2147483648
    %v290 = vsel %vm288, %v283, %v289
    %vm291 = vcmp.eq.s32.totalorder %v286, 2
    %v292 = vxor.u32 %v283, 2147483648
    %v293 = vsel %vm291, %v292, %v284
    %v294 = vsel %vm287, %v290, %v293
    %v295 = vsel %vm285, nan, %v294
    %v296 = vand.u32 2147483647, %v190
    %vm297 = vcmp.le.f32.partialorder %v296, 0.7853982
    %vm298 = vcmp.lt.s32.totalorder %v190, 0
    %v299 = vand.u32 %v190, 2139095040
    %v300 = vshrl.u32 %v299, 23
    %v301 = vsub.s32 %v300, 127
    %v302 = vand.u32 2147483647, %v190
    %v303 = vand.u32 %v302, 8388607
    %v304 = vor.u32 %v303, 8388608
    %v305 = vsub.s32 0, %v304
    %v306 = vadd.s32 %v301, 1
    %vm307 = vcmp.gt.s32.totalorder %v306, 0
    %v308 = vsel %vm307, %v306, 0
    %v309 = vshrl.u32 %v308, 5
    %v310 = vand.u32 %v308, 31
    %v311 = vsub.s32 32, %v310
    %v312 = vshrl.u32 683565275, %v311
    %v313 = vshll.u32 683565275, %v310
    %v314 = vshrl.u32 2475754826, %v311
    %v315 = vor.u32 %v313, %v314
    %v316 = vshll.u32 2475754826, %v310
    %v317 = vshrl.u32 2131351028, %v311
    %v318 = vor.u32 %v316, %v317
    %v319 = vshll.u32 2131351028, %v310
    %v320 = vshrl.u32 2102212464, %v311
    %v321 = vor.u32 %v319, %v320
    %v322 = vshll.u32 2102212464, %v310
    %v323 = vshrl.u32 920167782, %v311
    %v324 = vor.u32 %v322, %v323
    %v325 = vshll.u32 920167782, %v310
    %v326 = vshrl.u32 1326507024, %v311
    %v327 = vor.u32 %v325, %v326
    %vm328 = vcmp.lt.s32.totalorder %v309, 1
    %vm329 = vcmp.lt.s32.totalorder %v309, 2
    %vm330 = vcmp.lt.s32.totalorder %v309, 3
    %vm331 = vcmp.lt.s32.totalorder %v309, 4
    %v332 = vsel %vm328, %v312, %v315
    %v333 = vsel %vm331, %v321, 2102212464
    %v334 = vsel %vm330, %v318, %v333
    %v335 = vsel %vm329, %v332, %v334
    %v336 = vsel %vm328, %v315, %v318
    %v337 = vsel %vm331, %v324, 920167782
    %v338 = vsel %vm330, %v321, %v337
    %v339 = vsel %vm329, %v336, %v338
    %v340 = vsel %vm328, %v318, %v321
    %v341 = vsel %vm331, %v327, 1326507024
    %v342 = vsel %vm330, %v324, %v341
    %v343 = vsel %vm329, %v340, %v342
    %v344 = vshll.u32 %v304, 8
    %v345 = vmul.u32.u64.compose %v344, %v343
    %v346 = vextract.low.u32 %v345
    %v347 = vextract.high.u32 %v345
    %v348 = vmul.u32.u64.compose %v344, %v339
    %v349 = vextract.low.u32 %v348
    %v350 = vextract.high.u32 %v348
    %v351 = vmul.u32 %v344, %v335
    %v352 = vadd.s32 %v347, %v349
    %vm353 = vc.u32 %v347, %v349
    %v354 = vadd.s32 %v350, 1
    %v355 = vsel %vm353, %v354, %v350
    %v356 = vadd.s32 %v351, %v355
    %v357 = vadd.s32 %v356, 536870912
    %v358 = vshrl.u32 %v357, 30
    %v359 = vshll.u32 %v358, 30
    %v360 = vsub.s32 %v356, %v359
    %vm361 = vcmp.lt.s32.totalorder %v360, 0
    %v362 = vsub.s32 0, %v360
    %v363 = vsel %vm361, %v362, %v360
    %v364 = vclz %v363
    %v365 = vsub.s32 %v364, 2
    %vm366 = vcmp.gt.s32.totalorder 0, %v365
    %v367 = vsel %vm366, 0, %v365
    %v368 = vsub.s32 32, %v367
    %v369 = vshll.u32 %v360, %v367
    %v370 = vshrl.u32 %v352, %v368
    %v371 = vor.u32 %v369, %v370
    %v372 = vsub.s32 4294967266, %v367
    %v373 = vadd.s32 %v372, 127
    %v374 = vshll.u32 %v373, 23
    %v375 = vor.u32 4788187, %v374
    %v376 = vand.u32 2147483647, %v375
    %v378 = vcvt.s32.f32 %v371
    %v379 = vmul.f32 %v378, %v376
    %v380 = vxor.u32 %v379, 2147483648
    %v381 = vsel %vm298, %v380, %v379
    %v382 = vsub.s32 4, %v358
    %v383 = vsel %vm298, %v382, %v358
    %v384 = vsel %vm297, %v190, %v381
    %v385 = vsel %vm297, 0, %v383
    %v386 = vcosq.f32.pop %v384
    %v387 = vsinq.f32.pop %v384
    %vm388 = vweird.f32 %v190
    %v389 = vand.u32 %v385, 3
    %vm390 = vcmp.lt.s32.totalorder %v389, 2
    %vm391 = vcmp.eq.s32.totalorder %v389, 0
    %v392 = vxor.u32 %v387, 2147483648
    %v393 = vsel %vm391, %v386, %v392
    %vm394 = vcmp.eq.s32.totalorder %v389, 2
    %v395 = vxor.u32 %v386, 2147483648
    %v396 = vsel %vm394, %v395, %v387
    %v397 = vsel %vm390, %v393, %v396
    %v398 = vsel %vm388, nan, %v397
    %v399 = vand.u32 2147483647, %v191
    %vm400 = vcmp.le.f32.partialorder %v399, 0.7853982
    %vm401 = vcmp.lt.s32.totalorder %v191, 0
    %v402 = vand.u32 %v191, 2139095040
    %v403 = vshrl.u32 %v402, 23
    %v404 = vsub.s32 %v403, 127
    %v405 = vand.u32 2147483647, %v191
    %v406 = vand.u32 %v405, 8388607
    %v407 = vor.u32 %v406, 8388608
    %v408 = vsub.s32 0, %v407
    %v409 = vadd.s32 %v404, 1
    %vm410 = vcmp.gt.s32.totalorder %v409, 0
    %v411 = vsel %vm410, %v409, 0
    %v412 = vshrl.u32 %v411, 5
    %v413 = vand.u32 %v411, 31
    %v414 = vsub.s32 32, %v413
    %v415 = vshrl.u32 683565275, %v414
    %v416 = vshll.u32 683565275, %v413
    %v417 = vshrl.u32 2475754826, %v414
    %v418 = vor.u32 %v416, %v417
    %v419 = vshll.u32 2475754826, %v413
    %v420 = vshrl.u32 2131351028, %v414
    %v421 = vor.u32 %v419, %v420
    %v422 = vshll.u32 2131351028, %v413
    %v423 = vshrl.u32 2102212464, %v414
    %v424 = vor.u32 %v422, %v423
    %v425 = vshll.u32 2102212464, %v413
    %v426 = vshrl.u32 920167782, %v414
    %v427 = vor.u32 %v425, %v426
    %v428 = vshll.u32 920167782, %v413
    %v429 = vshrl.u32 1326507024, %v414
    %v430 = vor.u32 %v428, %v429
    %vm431 = vcmp.lt.s32.totalorder %v412, 1
    %vm432 = vcmp.lt.s32.totalorder %v412, 2
    %vm433 = vcmp.lt.s32.totalorder %v412, 3
    %vm434 = vcmp.lt.s32.totalorder %v412, 4
    %v435 = vsel %vm431, %v415, %v418
    %v436 = vsel %vm434, %v424, 2102212464
    %v437 = vsel %vm433, %v421, %v436
    %v438 = vsel %vm432, %v435, %v437
    %v439 = vsel %vm431, %v418, %v421
    %v440 = vsel %vm434, %v427, 920167782
    %v441 = vsel %vm433, %v424, %v440
    %v442 = vsel %vm432, %v439, %v441
    %v443 = vsel %vm431, %v421, %v424
    %v444 = vsel %vm434, %v430, 1326507024
    %v445 = vsel %vm433, %v427, %v444
    %v446 = vsel %vm432, %v443, %v445
    %v447 = vshll.u32 %v407, 8
    %v448 = vmul.u32.u64.compose %v447, %v446
    %v449 = vextract.low.u32 %v448
    %v450 = vextract.high.u32 %v448
    %v451 = vmul.u32.u64.compose %v447, %v442
    %v452 = vextract.low.u32 %v451
    %v453 = vextract.high.u32 %v451
    %v454 = vmul.u32 %v447, %v438
    %v455 = vadd.s32 %v450, %v452
    %vm456 = vc.u32 %v450, %v452
    %v457 = vadd.s32 %v453, 1
    %v458 = vsel %vm456, %v457, %v453
    %v459 = vadd.s32 %v454, %v458
    %v460 = vadd.s32 %v459, 536870912
    %v461 = vshrl.u32 %v460, 30
    %v462 = vshll.u32 %v461, 30
    %v463 = vsub.s32 %v459, %v462
    %vm464 = vcmp.lt.s32.totalorder %v463, 0
    %v465 = vsub.s32 0, %v463
    %v466 = vsel %vm464, %v465, %v463
    %v467 = vclz %v466
    %v468 = vsub.s32 %v467, 2
    %vm469 = vcmp.gt.s32.totalorder 0, %v468
    %v470 = vsel %vm469, 0, %v468
    %v471 = vsub.s32 32, %v470
    %v472 = vshll.u32 %v463, %v470
    %v473 = vshrl.u32 %v455, %v471
    %v474 = vor.u32 %v472, %v473
    %v475 = vsub.s32 4294967266, %v470
    %v476 = vadd.s32 %v475, 127
    %v477 = vshll.u32 %v476, 23
    %v478 = vor.u32 4788187, %v477
    %v479 = vand.u32 2147483647, %v478
    %v481 = vcvt.s32.f32 %v474
    %v482 = vmul.f32 %v481, %v479
    %v483 = vxor.u32 %v482, 2147483648
    %v484 = vsel %vm401, %v483, %v482
    %v485 = vsub.s32 4, %v461
    %v486 = vsel %vm401, %v485, %v461
    %v487 = vsel %vm400, %v191, %v484
    %v488 = vsel %vm400, 0, %v486
    %v489 = vcosq.f32.pop %v487
    %v490 = vsinq.f32.pop %v487
    %vm491 = vweird.f32 %v191
    %v492 = vand.u32 %v488, 3
    %vm493 = vcmp.lt.s32.totalorder %v492, 2
    %vm494 = vcmp.eq.s32.totalorder %v492, 0
    %v495 = vxor.u32 %v490, 2147483648
    %v496 = vsel %vm494, %v489, %v495
    %vm497 = vcmp.eq.s32.totalorder %v492, 2
    %v498 = vxor.u32 %v489, 2147483648
    %v499 = vsel %vm497, %v498, %v490
    %v500 = vsel %vm493, %v496, %v499
    %v501 = vsel %vm491, nan, %v500
    %v502 = vand.u32 2147483647, %v192
    %vm503 = vcmp.le.f32.partialorder %v502, 0.7853982
    %vm504 = vcmp.lt.s32.totalorder %v192, 0
    %v505 = vand.u32 %v192, 2139095040
    %v506 = vshrl.u32 %v505, 23
    %v507 = vsub.s32 %v506, 127
    %v508 = vand.u32 2147483647, %v192
    %v509 = vand.u32 %v508, 8388607
    %v510 = vor.u32 %v509, 8388608
    %v511 = vsub.s32 0, %v510
    %v512 = vadd.s32 %v507, 1
    %vm513 = vcmp.gt.s32.totalorder %v512, 0
    %v514 = vsel %vm513, %v512, 0
    %v515 = vshrl.u32 %v514, 5
    %v516 = vand.u32 %v514, 31
    %v517 = vsub.s32 32, %v516
    %v518 = vshrl.u32 683565275, %v517
    %v519 = vshll.u32 683565275, %v516
    %v520 = vshrl.u32 2475754826, %v517
    %v521 = vor.u32 %v519, %v520
    %v522 = vshll.u32 2475754826, %v516
    %v523 = vshrl.u32 2131351028, %v517
    %v524 = vor.u32 %v522, %v523
    %v525 = vshll.u32 2131351028, %v516
    %v526 = vshrl.u32 2102212464, %v517
    %v527 = vor.u32 %v525, %v526
    %v528 = vshll.u32 2102212464, %v516
    %v529 = vshrl.u32 920167782, %v517
    %v530 = vor.u32 %v528, %v529
    %v531 = vshll.u32 920167782, %v516
    %v532 = vshrl.u32 1326507024, %v517
    %v533 = vor.u32 %v531, %v532
    %vm534 = vcmp.lt.s32.totalorder %v515, 1
    %vm535 = vcmp.lt.s32.totalorder %v515, 2
    %vm536 = vcmp.lt.s32.totalorder %v515, 3
    %vm537 = vcmp.lt.s32.totalorder %v515, 4
    %v538 = vsel %vm534, %v518, %v521
    %v539 = vsel %vm537, %v527, 2102212464
    %v540 = vsel %vm536, %v524, %v539
    %v541 = vsel %vm535, %v538, %v540
    %v542 = vsel %vm534, %v521, %v524
    %v543 = vsel %vm537, %v530, 920167782
    %v544 = vsel %vm536, %v527, %v543
    %v545 = vsel %vm535, %v542, %v544
    %v546 = vsel %vm534, %v524, %v527
    %v547 = vsel %vm537, %v533, 1326507024
    %v548 = vsel %vm536, %v530, %v547
    %v549 = vsel %vm535, %v546, %v548
    %v550 = vshll.u32 %v510, 8
    %v551 = vmul.u32.u64.compose %v550, %v549
    %v552 = vextract.low.u32 %v551
    %v553 = vextract.high.u32 %v551
    %v554 = vmul.u32.u64.compose %v550, %v545
    %v555 = vextract.low.u32 %v554
    %v556 = vextract.high.u32 %v554
    %v557 = vmul.u32 %v550, %v541
    %v558 = vadd.s32 %v553, %v555
    %vm559 = vc.u32 %v553, %v555
    %v560 = vadd.s32 %v556, 1
    %v561 = vsel %vm559, %v560, %v556
    %v562 = vadd.s32 %v557, %v561
    %v563 = vadd.s32 %v562, 536870912
    %v564 = vshrl.u32 %v563, 30
    %v565 = vshll.u32 %v564, 30
    %v566 = vsub.s32 %v562, %v565
    %vm567 = vcmp.lt.s32.totalorder %v566, 0
    %v568 = vsub.s32 0, %v566
    %v569 = vsel %vm567, %v568, %v566
    %v570 = vclz %v569
    %v571 = vsub.s32 %v570, 2
    %vm572 = vcmp.gt.s32.totalorder 0, %v571
    %v573 = vsel %vm572, 0, %v571
    %v574 = vsub.s32 32, %v573
    %v575 = vshll.u32 %v566, %v573
    %v576 = vshrl.u32 %v558, %v574
    %v577 = vor.u32 %v575, %v576
    %v578 = vsub.s32 4294967266, %v573
    %v579 = vadd.s32 %v578, 127
    %v580 = vshll.u32 %v579, 23
    %v581 = vor.u32 4788187, %v580
    %v582 = vand.u32 2147483647, %v581
    %v584 = vcvt.s32.f32 %v577
    %v585 = vmul.f32 %v584, %v582
    %v586 = vxor.u32 %v585, 2147483648
    %v587 = vsel %vm504, %v586, %v585
    %v588 = vsub.s32 4, %v564
    %v589 = vsel %vm504, %v588, %v564
    %v590 = vsel %vm503, %v192, %v587
    %v591 = vsel %vm503, 0, %v589
    %v592 = vcosq.f32.pop %v590
    %v593 = vsinq.f32.pop %v590
    %vm594 = vweird.f32 %v192
    %v595 = vand.u32 %v591, 3
    %vm596 = vcmp.lt.s32.totalorder %v595, 2
    %vm597 = vcmp.eq.s32.totalorder %v595, 0
    %v598 = vxor.u32 %v593, 2147483648
    %v599 = vsel %vm597, %v592, %v598
    %vm600 = vcmp.eq.s32.totalorder %v595, 2
    %v601 = vxor.u32 %v592, 2147483648
    %v602 = vsel %vm600, %v601, %v593
    %v603 = vsel %vm596, %v599, %v602
    %v604 = vsel %vm594, nan, %v603
    %v605 = vmul.f32 %v167, %v295
    %v606 = vmul.f32 %v174, %v398
    %v607 = vmul.f32 %v181, %v501
    %v608 = vmul.f32 %v188, %v604
    %v609 = vld [vmem:[#allocation3] sm:$0xff]
    %v610 = vld [vmem:[#allocation3 + $0x8] sm:$0xff]
    %v611 = vmul.f32 %v605, 0.01
    %v612 = vmul.f32 %v606, 0.01
    %v613 = vmul.f32 %v607, 0.01
    %v614 = vmul.f32 %v608, 0.01
    %v619 = vcombine.low %v611, %v612
    %v620 = vcombine.low %v613, %v614
    %v623 = vadd.f32 %v609, %v619
    %v624 = vadd.f32 %v610, %v620
    %v625 = vadd.f32 %v623, 0.0
    %v626 = vadd.f32 %v624, 0.0
    %627 = vst [vmem:[#allocation6] sm:$0xff] %v625
    %628 = vst [vmem:[#allocation6 + $0x8] sm:$0xff] %v626
    // Predicated region
    $region14: #{tpu_custom_call.1} parent=1 // pred_check
      _
    $region15: #{tpu_custom_call.1} parent=1 // pred_check_branch
      %630 = sbr.rel (0) target = $region17
    $region16: #{tpu_custom_call.1} parent=1 // pred_region
      %s632 = ssub.s32 256, 256
      %633 = vsyncadd [#allocation5], %s632
      %s635 = sshll.u32 [#allocation6], 4
      %s636 = int_to_ptr.vmem [resolvable:$true] %s635
      %638 = dma.vmem_to_hbm [thread:$0]  %s636, 256, %s2, [#allocation5]
    $region17: #{tpu_custom_call.1} parent=1 // pred_fallthru
      _
    // Predicated region
    $region18: #{tpu_custom_call.1} parent=1 // pred_check
      _
    $region19: #{tpu_custom_call.1} parent=1 // pred_check_branch
      %640 = sbr.rel (0) target = $region21
    $region20: #{tpu_custom_call.1} parent=1 // pred_region
      %641 = dma.done [#allocation5], 256
    $region21: #{tpu_custom_call.1} parent=1 // pred_fallthru
      _
    %642 = vsyncpa [#allocation4], 1
    %643 = vsyncpa [#allocation5], 1

</llo_original>
